<compile_context>
chip_gen: v5e
topology: v5e:2x2
jax: 0.10.0
libtpu: 0.0.40
codegen_flags: <defaults>
</compile_context>

<pallas_src>
import functools
import math

import jax
import jax.numpy as jnp
from jax.experimental import pallas as pl
from jax.experimental.pallas import tpu as pltpu


# ----------------------------------------------------------------------------- in-kernel helpers
def _fast_recip(x):
    # EUP vrcp (its own VLIW slot) + two Newton steps on the VPU -> ~f32-exact 1/x without the
    # exact-divide sequence on the single EUP slot.
    r = pl.reciprocal(x, approx=True)
    r = r * (2.0 - x * r)
    r = r * (2.0 - x * r)
    return r


def _skl_terms(p, y, eps):
    # p * (rp - ry) * 2 with rp = -log(1/(p+eps) - 1 + eps), ry likewise.
    # 1/(x+eps) - 1 + eps == n_x / (x+eps) with n_x = (1-(x+eps)) + eps*(x+eps), which is strictly
    # positive for x in [0, 1] (p, y are clamped to <= 1 in the softmax helpers), so
    # rp - ry = log(pe * n_y) - log(ye * n_p): two logs, no extra reciprocal, args always > 0.
    pe = p + eps
    ye = y + eps
    n_p = (1.0 - pe) + eps * pe
    n_y = (1.0 - ye) + eps * ye
    return p * (jnp.log(pe * n_y) - jnp.log(ye * n_p)) * 2.0


def _softmax_pair_rows(x, t):
    # Row softmax over the last (lane) axis for both inputs, sharing a single per-row reciprocal:
    # inv = 1/(Sx*St), p = ex*St*inv, y = et*Sx*inv.
    ex = jnp.exp(x - jnp.max(x, axis=-1, keepdims=True))
    et = jnp.exp(t - jnp.max(t, axis=-1, keepdims=True))
    sx = jnp.sum(ex, axis=-1, keepdims=True)
    st = jnp.sum(et, axis=-1, keepdims=True)
    inv = _fast_recip(sx * st)
    p = jnp.minimum(ex * (st * inv), 1.0)
    y = jnp.minimum(et * (sx * inv), 1.0)
    return p, y


def _softmax_pair_packed(x, t, seg):
    # Segmented softmax: each 128-lane row holds 128//D original rows of width D.  The shift is the
    # shared per-packed-row max (a constant shift per segment, so it cancels exactly in the softmax
    # ratio); per-segment sums are computed AND broadcast back in one (tile,128)x(128,128) f32
    # matmul on the otherwise idle MXU.  One fused vrcp covers both normalisations.
    # NOTE: if all D logits of an original row sit > ~87 below the max logit of another row packed
    # into the same 128 lanes, its exp() fully underflows; the clamp below avoids inf/NaN but that
    # (pathological) row's contribution is dropped.  Use pack_lanes=False for such logit ranges.
    ex = jnp.exp(x - jnp.max(x, axis=-1, keepdims=True))
    et = jnp.exp(t - jnp.max(t, axis=-1, keepdims=True))
    sx = jnp.dot(ex, seg, preferred_element_type=jnp.float32)
    st = jnp.dot(et, seg, preferred_element_type=jnp.float32)
    inv = _fast_recip(jnp.maximum(sx * st, 1e-30))
    p = jnp.minimum(ex * (st * inv), 1.0)
    y = jnp.minimum(et * (sx * inv), 1.0)
    return p, y


def _store_tile_partial(out_ref, s):
    # One f32 partial per tile, written into a lane/sublane-aligned (8,128) block (element [0,0]).
    r = jax.lax.broadcasted_iota(jnp.int32, (8, 128), 0)
    l = jax.lax.broadcasted_iota(jnp.int32, (8, 128), 1)
    out_ref[...] = jnp.where((r == 0) & (l == 0), s, 0.0)


# ----------------------------------------------------------------------------------- kernels
def _skl_rows_kernel(preds_ref, target_ref, out_ref, *, eps, n_rows, need_mask):
    i = pl.program_id(0)
    x = preds_ref[...].astype(jnp.float32)
    t = target_ref[...].astype(jnp.float32)
    valid = None
    if need_mask:
        rid = i * x.shape[0] + jax.lax.broadcasted_iota(jnp.int32, x.shape, 0)
        valid = rid < n_rows
        x = jnp.where(valid, x, 0.0)
        t = jnp.where(valid, t, 0.0)
    p, y = _softmax_pair_rows(x, t)
    loss = _skl_terms(p, y, eps)
    if need_mask:
        loss = jnp.where(valid, loss, 0.0)
    _store_tile_partial(out_ref, jnp.sum(loss))


def _skl_packed_kernel(preds_ref, target_ref, seg_ref, out_ref, *, eps, n_rows, need_mask):
    i = pl.program_id(0)
    x = preds_ref[...].astype(jnp.float32)
    t = target_ref[...].astype(jnp.float32)
    seg = seg_ref[...]
    valid = None
    if need_mask:
        rid = i * x.shape[0] + jax.lax.broadcasted_iota(jnp.int32, x.shape, 0)
        valid = rid < n_rows  # n_rows = number of valid *packed* rows
        x = jnp.where(valid, x, 0.0)
        t = jnp.where(valid, t, 0.0)
    p, y = _softmax_pair_packed(x, t, seg)
    loss = _skl_terms(p, y, eps)
    if need_mask:
        loss = jnp.where(valid, loss, 0.0)
    _store_tile_partial(out_ref, jnp.sum(loss))


# ----------------------------------------------------------------------------------- wrapper
def _pick_row_tile(n_rows, width, max_rows=None):
    # ~1 MiB of f32 per input block: big enough to amortise the ~0.35 us per-grid-step overhead,
    # small enough that double-buffered inputs + f32 temporaries fit the 48 MiB VMEM budget on
    # every generation (v7x has only 64 MiB/TC).
    tile = (1024 * 1024) // max(1, 4 * width)
    tile = min(tile, 2048)
    if max_rows is not None:
        tile = min(tile, int(max_rows))
    tile = max(tile, 8)
    if tile >= n_rows:
        return n_rows
    return (tile // 8) * 8


def skl_loss(preds, target, epsilon=1e-8, pack_lanes=True, max_rows_per_tile=None):
    if preds.shape != target.shape:
        raise ValueError(f"preds/target shape mismatch: {preds.shape} vs {target.shape}")
    d = preds.shape[-1]
    n = math.prod(preds.shape[:-1]) if preds.ndim > 1 else 1
    x = preds.reshape(n, d)
    t = target.reshape(n, d)

    use_packed = (pack_lanes and d < 128 and 128 % d == 0 and n % (128 // d) == 0)
    if use_packed:
        g = 128 // d
        rows, width = n // g, 128
        x2 = x.reshape(rows, width)          # free row-major reshape: g rows per 128-lane row
        t2 = t.reshape(rows, width)
        lane = jnp.arange(width, dtype=jnp.int32)
        seg = (lane[:, None] // d == lane[None, :] // d).astype(jnp.float32)  # same-segment one-hot
        extra_inputs = (seg,)
        extra_specs = [pl.BlockSpec((width, width), lambda i: (0, 0))]
        kernel_fn = _skl_packed_kernel
    else:
        # TODO(synk): D < 128 that does not divide 128 still runs lane-sparse on the general path.
        rows, width = n, d
        x2, t2 = x, t
        extra_inputs = ()
        extra_specs = []
        kernel_fn = _skl_rows_kernel

    tile = _pick_row_tile(rows, width, max_rows_per_tile)
    num_tiles = -(-rows // tile)
    need_mask = (rows % tile) != 0

    kernel = functools.partial(kernel_fn, eps=float(epsilon), n_rows=rows, need_mask=need_mask)

    partials = pl.pallas_call(
        kernel,
        out_shape=jax.ShapeDtypeStruct((num_tiles * 8, 128), jnp.float32),
        grid_spec=pltpu.PrefetchScalarGridSpec(
            num_scalar_prefetch=0,
            grid=(num_tiles,),
            in_specs=[pl.BlockSpec((tile, width), lambda i: (i, 0)),
                      pl.BlockSpec((tile, width), lambda i: (i, 0))] + extra_specs,
            out_specs=pl.BlockSpec((8, 128), lambda i: (i, 0)),
        ),
        compiler_params=pltpu.CompilerParams(
            dimension_semantics=("parallel",),          # no cross-step state -> megacore on v7x
            vmem_limit_bytes=48 * 1024 * 1024,
        ),
    )(x2, t2, *extra_inputs)

    return jnp.sum(partials) / float(n)


# ----------------------------------------------------------------------------------- reference
def _skl_ref(preds, target, epsilon=1e-8):
    d = preds.shape[-1]
    logit = preds.reshape(-1, d).astype(jnp.float32)
    targ = target.reshape(-1, target.shape[-1]).astype(jnp.float32)
    bs = logit.shape[0]
    p = jax.nn.softmax(logit, axis=1)
    y = jax.nn.softmax(targ, axis=1)
    rp = -jnp.log(1.0 / (p + epsilon) - 1.0 + epsilon)
    ry = -jnp.log(1.0 / (y + epsilon) - 1.0 + epsilon)
    return jnp.sum(p * (rp - ry) * 2.0) / bs


if __name__ == "__main__":
    key = jax.random.PRNGKey(0)
    k1, k2, k3, k4 = jax.random.split(key, 4)

    # 1) Demo shape: (batch=2, channels=4, 16, 16) -> 128 rows of width 16.
    #    D=16 divides 128 -> lane-packed fast path (8 rows per 128-lane register row).
    a = jax.random.normal(k1, (2, 4, 16, 16), dtype=jnp.float32)
    b = jax.random.normal(k2, (2, 4, 16, 16), dtype=jnp.float32)
    out = jax.block_until_ready(skl_loss(a, b))
    ref = _skl_ref(a, b)
    assert jnp.allclose(out, ref, rtol=1e-4, atol=1e-5), (out, ref)

    # 2) bf16 inputs stay bf16 on the wire (halved HBM traffic); math is still f32 in-kernel.
    a16, b16 = a.astype(jnp.bfloat16), b.astype(jnp.bfloat16)
    out = jax.block_until_ready(skl_loss(a16, b16))
    ref = _skl_ref(a16, b16)
    assert jnp.allclose(out, ref, rtol=1e-4, atol=1e-5), (out, ref)

    # 3) General path (D=160 does not divide 128) with a forced small tile so the masked remainder
    #    tile is exercised (15 rows, tile of 8).
    c = jax.random.normal(k3, (3, 5, 160), dtype=jnp.float32)
    e = jax.random.normal(k4, (3, 5, 160), dtype=jnp.float32)
    out = jax.block_until_ready(skl_loss(c, e, max_rows_per_tile=8))
    ref = _skl_ref(c, e)
    assert jnp.allclose(out, ref, rtol=1e-4, atol=1e-5), (out, ref)

    # 4) Packed path with a ragged tile count (20 packed rows, tile of 8 -> masked remainder).
    f1 = jax.random.normal(k1, (2, 5, 16, 16), dtype=jnp.float32)
    f2 = jax.random.normal(k2, (2, 5, 16, 16), dtype=jnp.float32)
    out = jax.block_until_ready(skl_loss(f1, f2, max_rows_per_tile=8))
    ref = _skl_ref(f1, f2)
    assert jnp.allclose(out, ref, rtol=1e-4, atol=1e-5), (out, ref)

    print("KERNEL_OK")
</pallas_src>

<mosaic_0001>
module attributes {stable_mosaic.version = 11 : i64} {
  func.func @_skl_packed_kernel(%arg0: i32, %arg1: memref<16x128xf32, #tpu.memory_space<vmem>>, %arg2: memref<16x128xf32, #tpu.memory_space<vmem>>, %arg3: memref<128x128xf32, #tpu.memory_space<vmem>>, %arg4: memref<8x128xf32, #tpu.memory_space<vmem>>) attributes {dimension_semantics = [#tpu.dimension_semantics<parallel>], iteration_bounds = array<i64: 1>, scalar_prefetch = 0 : i64, scratch_operands = 0 : i64, tpu.core_type = #tpu.core_type<tc>, window_params = [{transform_indices = @transform_0, window_bounds = array<i64: 16, 128>}, {transform_indices = @transform_1, window_bounds = array<i64: 16, 128>}, {pipeline_mode = #tpu.pipeline_mode<synchronous>, transform_indices = @transform_2, window_bounds = array<i64: 128, 128>}, {transform_indices = @transform_3, window_bounds = array<i64: 8, 128>}]} {
    %c0 = arith.constant 0 : index
    %c0_0 = arith.constant 0 : index
    %0 = vector.load %arg1[%c0, %c0_0] : memref<16x128xf32, #tpu.memory_space<vmem>>, vector<16x128xf32>
    %c0_1 = arith.constant 0 : index
    %c0_2 = arith.constant 0 : index
    %1 = vector.load %arg2[%c0_1, %c0_2] : memref<16x128xf32, #tpu.memory_space<vmem>>, vector<16x128xf32>
    %c0_3 = arith.constant 0 : index
    %c0_4 = arith.constant 0 : index
    %2 = vector.load %arg3[%c0_3, %c0_4] : memref<128x128xf32, #tpu.memory_space<vmem>>, vector<128x128xf32>
    %cst = arith.constant dense<0xFF800000> : vector<16xf32>
    %3 = vector.multi_reduction <maximumf>, %0, %cst [1] : vector<16x128xf32> to vector<16xf32>
    %4 = vector.shape_cast %3 : vector<16xf32> to vector<16x1xf32>
    %5 = vector.broadcast %4 : vector<16x1xf32> to vector<16x128xf32>
    %6 = arith.subf %0, %5 : vector<16x128xf32>
    %7 = math.exp %6 : vector<16x128xf32>
    %cst_5 = arith.constant dense<0xFF800000> : vector<16xf32>
    %8 = vector.multi_reduction <maximumf>, %1, %cst_5 [1] : vector<16x128xf32> to vector<16xf32>
    %9 = vector.shape_cast %8 : vector<16xf32> to vector<16x1xf32>
    %10 = vector.broadcast %9 : vector<16x1xf32> to vector<16x128xf32>
    %11 = arith.subf %1, %10 : vector<16x128xf32>
    %12 = math.exp %11 : vector<16x128xf32>
    %cst_6 = arith.constant dense<0.000000e+00> : vector<16x128xf32>
    %13 = tpu.matmul %7, %2, %cst_6 {dimension_numbers = #tpu.dot_dimension_numbers<[1], [0], [0], [1], [0, 0, 1, 1], [], []>} : vector<16x128xf32>, vector<128x128xf32>, vector<16x128xf32> -> vector<16x128xf32>
    %cst_7 = arith.constant dense<0.000000e+00> : vector<16x128xf32>
    %14 = tpu.matmul %12, %2, %cst_7 {dimension_numbers = #tpu.dot_dimension_numbers<[1], [0], [0], [1], [0, 0, 1, 1], [], []>} : vector<16x128xf32>, vector<128x128xf32>, vector<16x128xf32> -> vector<16x128xf32>
    %15 = arith.mulf %13, %14 : vector<16x128xf32>
    %cst_8 = arith.constant 1.000000e-30 : f32
    %16 = vector.broadcast %cst_8 : f32 to vector<16x128xf32>
    %17 = arith.maximumf %15, %16 : vector<16x128xf32>
    %18 = tpu.reciprocal %17 {approx = true} : vector<16x128xf32> -> vector<16x128xf32>
    %19 = arith.mulf %17, %18 : vector<16x128xf32>
    %cst_9 = arith.constant 2.000000e+00 : f32
    %20 = vector.broadcast %cst_9 : f32 to vector<16x128xf32>
    %21 = arith.subf %20, %19 : vector<16x128xf32>
    %22 = arith.mulf %18, %21 : vector<16x128xf32>
    %23 = arith.mulf %17, %22 : vector<16x128xf32>
    %cst_10 = arith.constant 2.000000e+00 : f32
    %24 = vector.broadcast %cst_10 : f32 to vector<16x128xf32>
    %25 = arith.subf %24, %23 : vector<16x128xf32>
    %26 = arith.mulf %22, %25 : vector<16x128xf32>
    %27 = arith.mulf %14, %26 : vector<16x128xf32>
    %28 = arith.mulf %7, %27 : vector<16x128xf32>
    %cst_11 = arith.constant 1.000000e+00 : f32
    %29 = vector.broadcast %cst_11 : f32 to vector<16x128xf32>
    %30 = arith.minimumf %28, %29 : vector<16x128xf32>
    %31 = arith.mulf %13, %26 : vector<16x128xf32>
    %32 = arith.mulf %12, %31 : vector<16x128xf32>
    %cst_12 = arith.constant 1.000000e+00 : f32
    %33 = vector.broadcast %cst_12 : f32 to vector<16x128xf32>
    %34 = arith.minimumf %32, %33 : vector<16x128xf32>
    %cst_13 = arith.constant 9.99999993E-9 : f32
    %35 = vector.broadcast %cst_13 : f32 to vector<16x128xf32>
    %36 = arith.addf %30, %35 : vector<16x128xf32>
    %cst_14 = arith.constant 9.99999993E-9 : f32
    %37 = vector.broadcast %cst_14 : f32 to vector<16x128xf32>
    %38 = arith.addf %34, %37 : vector<16x128xf32>
    %cst_15 = arith.constant 1.000000e+00 : f32
    %39 = vector.broadcast %cst_15 : f32 to vector<16x128xf32>
    %40 = arith.subf %39, %36 : vector<16x128xf32>
    %cst_16 = arith.constant 9.99999993E-9 : f32
    %41 = vector.broadcast %cst_16 : f32 to vector<16x128xf32>
    %42 = arith.mulf %41, %36 : vector<16x128xf32>
    %43 = arith.addf %40, %42 : vector<16x128xf32>
    %cst_17 = arith.constant 1.000000e+00 : f32
    %44 = vector.broadcast %cst_17 : f32 to vector<16x128xf32>
    %45 = arith.subf %44, %38 : vector<16x128xf32>
    %cst_18 = arith.constant 9.99999993E-9 : f32
    %46 = vector.broadcast %cst_18 : f32 to vector<16x128xf32>
    %47 = arith.mulf %46, %38 : vector<16x128xf32>
    %48 = arith.addf %45, %47 : vector<16x128xf32>
    %49 = arith.mulf %36, %48 : vector<16x128xf32>
    %50 = math.log %49 : vector<16x128xf32>
    %51 = arith.mulf %38, %43 : vector<16x128xf32>
    %52 = math.log %51 : vector<16x128xf32>
    %53 = arith.subf %50, %52 : vector<16x128xf32>
    %54 = arith.mulf %30, %53 : vector<16x128xf32>
    %cst_19 = arith.constant 2.000000e+00 : f32
    %55 = vector.broadcast %cst_19 : f32 to vector<16x128xf32>
    %56 = arith.mulf %54, %55 : vector<16x128xf32>
    %57 = vector.shape_cast %56 : vector<16x128xf32> to vector<1x16x128xf32>
    %cst_20 = arith.constant dense<0.000000e+00> : vector<1xf32>
    %58 = vector.multi_reduction <add>, %57, %cst_20 [1, 2] : vector<1x16x128xf32> to vector<1xf32>
    %59 = vector.shape_cast %58 : vector<1xf32> to vector<1x1x1xf32>
    %60 = vector.extract %59[0, 0, 0] : f32 from vector<1x1x1xf32>
    %61 = tpu.iota {dimensions = array<i32: 0>} : vector<8x128xi32>
    %62 = tpu.iota {dimensions = array<i32: 1>} : vector<8x128xi32>
    %c0_i32 = arith.constant 0 : i32
    %63 = vector.broadcast %c0_i32 : i32 to vector<8x128xi32>
    %64 = arith.cmpi eq, %61, %63 : vector<8x128xi32>
    %c0_i32_21 = arith.constant 0 : i32
    %65 = vector.broadcast %c0_i32_21 : i32 to vector<8x128xi32>
    %66 = arith.cmpi eq, %62, %65 : vector<8x128xi32>
    %67 = arith.andi %64, %66 : vector<8x128xi1>
    %cst_22 = arith.constant 0.000000e+00 : f32
    %68 = vector.broadcast %60 : f32 to vector<8x128xf32>
    %69 = vector.broadcast %cst_22 : f32 to vector<8x128xf32>
    %70 = arith.select %67, %68, %69 : vector<8x128xi1>, vector<8x128xf32>
    %c0_23 = arith.constant 0 : index
    %c0_24 = arith.constant 0 : index
    %71 = vector.load %arg4[%c0_23, %c0_24] : memref<8x128xf32, #tpu.memory_space<vmem>>, vector<8x128xf32>
    tpu.vector_store %arg4[%c0_23, %c0_24], %70 {strides = array<i32>} : memref<8x128xf32, #tpu.memory_space<vmem>>, vector<8x128xf32>,
    return
  }
  func.func @transform_0(%arg0: i32) -> (i32, i32) {
    %c0_i32 = arith.constant 0 : i32
    %c0_i32_0 = arith.constant 0 : i32
    return %arg0, %c0_i32 : i32, i32
  }
  func.func @transform_1(%arg0: i32) -> (i32, i32) {
    %c0_i32 = arith.constant 0 : i32
    %c0_i32_0 = arith.constant 0 : i32
    return %arg0, %c0_i32 : i32, i32
  }
  func.func @transform_2(%arg0: i32) -> (i32, i32) {
    %c0_i32 = arith.constant 0 : i32
    %c0_i32_0 = arith.constant 0 : i32
    %c0_i32_1 = arith.constant 0 : i32
    return %c0_i32, %c0_i32_0 : i32, i32
  }
  func.func @transform_3(%arg0: i32) -> (i32, i32) {
    %c0_i32 = arith.constant 0 : i32
    %c0_i32_0 = arith.constant 0 : i32
    return %arg0, %c0_i32 : i32, i32
  }
}

</mosaic_0001>

<llo_original>
// kernel: tpu_custom_call.1
$region0: #{tpu_custom_call.1}
  #allocation0 [shape = 'u32[]', space=smem, size = 0x4, offset = 0x4, fixed_abs, tag = 'smem constant byte address 0x4 - core index']
  #allocation1 [shape = 'u32[72,128]{1,0:T(1,128)}', space=vmem, size = 0x9000, scoped, tag = 'internal scratch']
  %s0 = inlined_call_operand.hbm [shape: f32[16,128], index: 0, kind: input, shape index: {}]
  %s1 = inlined_call_operand.hbm [shape: f32[16,128], index: 1, kind: input, shape index: {}]
  %s2 = inlined_call_operand.hbm [shape: f32[128,128], index: 2, kind: input, shape index: {}]
  %s3 = inlined_call_operand.hbm [shape: f32[8,128], index: 3, kind: output, shape index: {}]
  %s4 = sld [smem:[#allocation0]]
  $region34: #{tpu_custom_call.1} parent=0
    _
  %s6 = ssub.s32 1, %s4
  %s7 = scalar_select 0, %s6, %s4
  $region1: #{tpu_custom_call.1} parent=0
    #allocation2 [shape = 'u8[8192]{0}', space=vmem, size = 0x2000, scoped, tag = 'input window, operand 0, single buffered']
    #allocation3 [shape = 's32[1]{0}', space=sflag, size = 0x4, scoped, tag = 'scoped memory for tpu_custom_call.1']
    #allocation4 [shape = 's32[1]{0}', space=sflag, size = 0x4, scoped, tag = 'scoped memory for tpu_custom_call.1']
    #allocation5 [shape = 'u8[8192]{0}', space=vmem, size = 0x2000, scoped, tag = 'input window, operand 1, single buffered']
    #allocation6 [shape = 's32[1]{0}', space=sflag, size = 0x4, scoped, tag = 'scoped memory for tpu_custom_call.1']
    #allocation7 [shape = 'u8[65536]{0}', space=vmem, size = 0x10000, scoped, tag = 'input window, operand 2, single buffered']
    #allocation8 [shape = 'u8[4096]{0}', space=vmem, size = 0x1000, scoped, tag = 'output window, operand 0, single buffered']
    %8 = vsyncpa [#allocation3], 0
    %9 = vsyncpa [#allocation6], 0
    %10 = vsyncpa [#allocation4], 0
    // Predicated region
    $region2: #{tpu_custom_call.1} parent=1 // pred_check
      _
    $region3: #{tpu_custom_call.1} parent=1 // pred_check_branch
      %12 = sbr.rel (0) target = $region5
    $region4: #{tpu_custom_call.1} parent=1 // pred_region
      %14 = vsyncadd [#allocation3], 0
      %s15 = sshll.u32 %s0, 4
      %s16 = int_to_ptr.hbm [resolvable:$true] %s15
      %s17 = sshll.u32 [#allocation2], 4
      %s18 = int_to_ptr.vmem [resolvable:$true] %s17
      %23 = dma.hbm_to_vmem [thread:$0]  %s16, 256, %s18, [#allocation3], 128, 128, 8
    $region5: #{tpu_custom_call.1} parent=1 // pred_fallthru
      _
    // Predicated region
    $region6: #{tpu_custom_call.1} parent=1 // pred_check
      _
    $region7: #{tpu_custom_call.1} parent=1 // pred_check_branch
      %25 = sbr.rel (0) target = $region9
    $region8: #{tpu_custom_call.1} parent=1 // pred_region
      %27 = vsyncadd [#allocation6], 0
      %s28 = sshll.u32 %s1, 4
      %s29 = int_to_ptr.hbm [resolvable:$true] %s28
      %s30 = sshll.u32 [#allocation5], 4
      %s31 = int_to_ptr.vmem [resolvable:$true] %s30
      %36 = dma.hbm_to_vmem [thread:$0]  %s29, 256, %s31, [#allocation6], 128, 128, 8
    $region9: #{tpu_custom_call.1} parent=1 // pred_fallthru
      _
    // Predicated region
    $region10: #{tpu_custom_call.1} parent=1 // pred_check
      _
    $region11: #{tpu_custom_call.1} parent=1 // pred_check_branch
      %38 = sbr.rel (0) target = $region13
    $region12: #{tpu_custom_call.1} parent=1 // pred_region
      %40 = vsyncadd [#allocation6], 0
      %s41 = sshll.u32 %s2, 4
      %s42 = int_to_ptr.hbm [resolvable:$true] %s41
      %s43 = sshll.u32 [#allocation7], 4
      %s44 = int_to_ptr.vmem [resolvable:$true] %s43
      %49 = dma.hbm_to_vmem [thread:$0]  %s42, 2048, %s44, [#allocation6], 128, 128, 8
    $region13: #{tpu_custom_call.1} parent=1 // pred_fallthru
      _
    // Predicated region
    $region14: #{tpu_custom_call.1} parent=1 // pred_check
      _
    $region15: #{tpu_custom_call.1} parent=1 // pred_check_branch
      %51 = sbr.rel (0) target = $region17
    $region16: #{tpu_custom_call.1} parent=1 // pred_region
      %53 = dma.done [#allocation3], 256
    $region17: #{tpu_custom_call.1} parent=1 // pred_fallthru
      _
    // Predicated region
    $region18: #{tpu_custom_call.1} parent=1 // pred_check
      _
    $region19: #{tpu_custom_call.1} parent=1 // pred_check_branch
      %55 = sbr.rel (0) target = $region21
    $region20: #{tpu_custom_call.1} parent=1 // pred_region
      %57 = dma.done [#allocation6], 256
    $region21: #{tpu_custom_call.1} parent=1 // pred_fallthru
      _
    // Predicated region
    $region22: #{tpu_custom_call.1} parent=1 // pred_check
      _
    $region23: #{tpu_custom_call.1} parent=1 // pred_check_branch
      %59 = sbr.rel (0) target = $region25
    $region24: #{tpu_custom_call.1} parent=1 // pred_region
      %61 = dma.done [#allocation6], 2048
    $region25: #{tpu_custom_call.1} parent=1 // pred_fallthru
      _
    %v62 = vld [vmem:[#allocation2] sm:$0xff]
    %v63 = vld [vmem:[#allocation2 + $0x8] sm:$0xff]
    %v64 = vld [vmem:[#allocation5] sm:$0xff]
    %v65 = vld [vmem:[#allocation5 + $0x8] sm:$0xff]
    %v66 = vld [vmem:[#allocation7] sm:$0xff]
    %v67 = vld [vmem:[#allocation7 + $0x8] sm:$0xff]
    %v68 = vld [vmem:[#allocation7 + $0x10] sm:$0xff]
    %v69 = vld [vmem:[#allocation7 + $0x18] sm:$0xff]
    %v70 = vld [vmem:[#allocation7 + $0x20] sm:$0xff]
    %v71 = vld [vmem:[#allocation7 + $0x28] sm:$0xff]
    %v72 = vld [vmem:[#allocation7 + $0x30] sm:$0xff]
    %v73 = vld [vmem:[#allocation7 + $0x38] sm:$0xff]
    %v74 = vld [vmem:[#allocation7 + $0x40] sm:$0xff]
    %v75 = vld [vmem:[#allocation7 + $0x48] sm:$0xff]
    %v76 = vld [vmem:[#allocation7 + $0x50] sm:$0xff]
    %v77 = vld [vmem:[#allocation7 + $0x58] sm:$0xff]
    %v78 = vld [vmem:[#allocation7 + $0x60] sm:$0xff]
    %v79 = vld [vmem:[#allocation7 + $0x68] sm:$0xff]
    %v80 = vld [vmem:[#allocation7 + $0x70] sm:$0xff]
    %v81 = vld [vmem:[#allocation7 + $0x78] sm:$0xff]
    %82 = vmax.xlane.f32.xlu0 %v62
    %v83 = vpop.xlane.xlu0 %82
    %84 = vmax.xlane.f32.xlu0 %v63
    %v85 = vpop.xlane.xlu0 %84
    %v86 = vsub.f32 %v62, %v83
    %v87 = vsub.f32 %v63, %v85
    %v88 = vmul.f32 %v86, 1.442695
    %v89 = vpow.pop %v88
    %v90 = vmul.f32 %v87, 1.442695
    %v91 = vpow.pop %v90
    %92 = vmax.xlane.f32.xlu0 %v64
    %v93 = vpop.xlane.xlu0 %92
    %94 = vmax.xlane.f32.xlu0 %v65
    %v95 = vpop.xlane.xlu0 %94
    %v96 = vsub.f32 %v64, %v93
    %v97 = vsub.f32 %v65, %v95
    %v98 = vmul.f32 %v96, 1.442695
    %v99 = vpow.pop %v98
    %v100 = vmul.f32 %v97, 1.442695
    %v101 = vpow.pop %v100
    %102 = vmatpush.msra.mxu0 %v81
    %103 = vmatpush.msra.mxu0 %v80
    %104 = vmatpush.msra.mxu0 %v79
    %105 = vmatpush.msra.mxu0 %v78
    %106 = vmatpush.msra.mxu0 %v77
    %107 = vmatpush.msra.mxu0 %v76
    %108 = vmatpush.msra.mxu0 %v75
    %109 = vmatpush.msra.mxu0 %v74
    %110 = vmatpush.msra.mxu0 %v73
    %111 = vmatpush.msra.mxu0 %v72
    %112 = vmatpush.msra.mxu0 %v71
    %113 = vmatpush.msra.mxu0 %v70
    %114 = vmatpush.msra.mxu0 %v69
    %115 = vmatpush.msra.mxu0 %v68
    %116 = vmatpush.msra.mxu0 %v67
    %117 = vmatpush.msra.mxu0 %v66
    %118 = vmatmul.f32.gmra.mxu0 %v89
    %v119 = vpop.f32.mrf.mxu0
    %v120 = vadd.f32 0.0, %v119
    %121 = vmatmul.f32.gmra.mxu0 %v91
    %v122 = vpop.f32.mrf.mxu0
    %v123 = vadd.f32 0.0, %v122
    %124 = vdwg.mxu0
    %125 = vmatpush.msra.mxu0 %v81
    %126 = vmatpush.msra.mxu0 %v80
    %127 = vmatpush.msra.mxu0 %v79
    %128 = vmatpush.msra.mxu0 %v78
    %129 = vmatpush.msra.mxu0 %v77
    %130 = vmatpush.msra.mxu0 %v76
    %131 = vmatpush.msra.mxu0 %v75
    %132 = vmatpush.msra.mxu0 %v74
    %133 = vmatpush.msra.mxu0 %v73
    %134 = vmatpush.msra.mxu0 %v72
    %135 = vmatpush.msra.mxu0 %v71
    %136 = vmatpush.msra.mxu0 %v70
    %137 = vmatpush.msra.mxu0 %v69
    %138 = vmatpush.msra.mxu0 %v68
    %139 = vmatpush.msra.mxu0 %v67
    %140 = vmatpush.msra.mxu0 %v66
    %141 = vmatmul.f32.gmra.mxu0 %v99
    %v142 = vpop.f32.mrf.mxu0
    %v143 = vadd.f32 0.0, %v142
    %144 = vmatmul.f32.gmra.mxu0 %v101
    %v145 = vpop.f32.mrf.mxu0
    %v146 = vadd.f32 0.0, %v145
    %147 = vdwg.mxu0
    %v148 = vmul.f32 %v120, %v143
    %v149 = vmul.f32 %v123, %v146
    %v150 = vmax.f32 %v148, 1e-30
    %v151 = vmax.f32 %v149, 1e-30
    %v152 = vrcp.pop %v150
    %v153 = vrcp.pop %v151
    %v154 = vmul.f32 %v150, %v152
    %v155 = vmul.f32 %v151, %v153
    %v156 = vsub.f32 2.0, %v154
    %v157 = vsub.f32 2.0, %v155
    %v158 = vmul.f32 %v152, %v156
    %v159 = vmul.f32 %v153, %v157
    %v160 = vmul.f32 %v150, %v158
    %v161 = vmul.f32 %v151, %v159
    %v162 = vsub.f32 2.0, %v160
    %v163 = vsub.f32 2.0, %v161
    %v164 = vmul.f32 %v158, %v162
    %v165 = vmul.f32 %v159, %v163
    %v166 = vmul.f32 %v143, %v164
    %v167 = vmul.f32 %v146, %v165
    %v168 = vmul.f32 %v89, %v166
    %v169 = vmul.f32 %v91, %v167
    %v170 = vmin.f32 %v168, 1.0
    %v171 = vmin.f32 %v169, 1.0
    %v172 = vmul.f32 %v120, %v164
    %v173 = vmul.f32 %v123, %v165
    %v174 = vmul.f32 %v99, %v172
    %v175 = vmul.f32 %v101, %v173
    %v176 = vmin.f32 %v174, 1.0
    %v177 = vmin.f32 %v175, 1.0
    %v178 = vadd.f32 %v170, 1e-08
    %v179 = vadd.f32 %v171, 1e-08
    %v180 = vadd.f32 %v176, 1e-08
    %v181 = vadd.f32 %v177, 1e-08
    %v182 = vsub.f32 1.0, %v178
    %v183 = vsub.f32 1.0, %v179
    %v184 = vmul.f32 %v178, 1e-08
    %v185 = vmul.f32 %v179, 1e-08
    %v186 = vadd.f32 %v182, %v184
    %v187 = vadd.f32 %v183, %v185
    %v188 = vsub.f32 1.0, %v180
    %v189 = vsub.f32 1.0, %v181
    %v190 = vmul.f32 %v180, 1e-08
    %v191 = vmul.f32 %v181, 1e-08
    %v192 = vadd.f32 %v188, %v190
    %v193 = vadd.f32 %v189, %v191
    %v194 = vmul.f32 %v178, %v192
    %v195 = vmul.f32 %v179, %v193
    %v196 = vlog2.pop %v194
    %v197 = vmul.f32 %v196, 0.6931472
    %v198 = vlog2.pop %v195
    %v199 = vmul.f32 %v198, 0.6931472
    %v200 = vmul.f32 %v180, %v186
    %v201 = vmul.f32 %v181, %v187
    %v202 = vlog2.pop %v200
    %v203 = vmul.f32 %v202, 0.6931472
    %v204 = vlog2.pop %v201
    %v205 = vmul.f32 %v204, 0.6931472
    %v206 = vsub.f32 %v197, %v203
    %v207 = vsub.f32 %v199, %v205
    %v208 = vmul.f32 %v170, %v206
    %v209 = vmul.f32 %v171, %v207
    %v210 = vmul.f32 %v208, 2.0
    %v211 = vmul.f32 %v209, 2.0
    %v212 = vadd.f32 %v210, %v211
    %213 = vadd.xlane.f32.xlu0 %v212
    %v214 = vpop.xlane.xlu0 %213
    %v215 = vrot.slane %v214, 4
    %v216 = vadd.f32 %v214, %v215
    %v217 = vrot.slane %v216, 2
    %v218 = vadd.f32 %v216, %v217
    %v219 = vrot.slane %v218, 1
    %v220 = vadd.f32 %v218, %v219
    %s221 = vtos %v220
    %v222 = vlaneseq
    %v223 = vshrl.u32 %v222, 7
    %v224 = vlaneseq
    %v225 = vand.u32 %v224, 127
    %vm226 = vcmp.eq.s32.totalorder %v223, 0
    %vm227 = vcmp.eq.s32.totalorder %v225, 0
    %vm228 = vmand %vm226, %vm227
    %v229 = vstv %s221
    %v230 = vsel %vm228, %v229, 0.0
    %231 = vst [vmem:[#allocation8] sm:$0xff] %v230
    // Predicated region
    $region26: #{tpu_custom_call.1} parent=1 // pred_check
      _
    $region27: #{tpu_custom_call.1} parent=1 // pred_check_branch
      %233 = sbr.rel (0) target = $region29
    $region28: #{tpu_custom_call.1} parent=1 // pred_region
      %235 = vsyncadd [#allocation4], 0
      %s237 = sshll.u32 [#allocation8], 4
      %s238 = int_to_ptr.vmem [resolvable:$true] %s237
      %s239 = sshll.u32 %s3, 4
      %s240 = int_to_ptr.hbm [resolvable:$true] %s239
      %242 = dma.vmem_to_hbm [thread:$0]  %s238, 128, %s240, [#allocation4]
    $region29: #{tpu_custom_call.1} parent=1 // pred_fallthru
      _
    // Predicated region
    $region30: #{tpu_custom_call.1} parent=1 // pred_check
      _
    $region31: #{tpu_custom_call.1} parent=1 // pred_check_branch
      %244 = sbr.rel (0) target = $region33
    $region32: #{tpu_custom_call.1} parent=1 // pred_region
      %246 = dma.done [#allocation4], 128
    $region33: #{tpu_custom_call.1} parent=1 // pred_fallthru
      _
    %247 = vsyncpa [#allocation3], 1
    %248 = vsyncpa [#allocation6], 1
    %249 = vsyncpa [#allocation4], 1

</llo_original>
